<compile_context>
chip_gen: v6e
topology: v6e:2x2x1
jax: 0.10.0
libtpu: 0.0.40
codegen_flags: <defaults>
</compile_context>

<pallas_src>
import functools
import math

import jax
import jax.numpy as jnp
from jax import lax
from jax.experimental import pallas as pl
from jax.experimental.pallas import tpu as pltpu


def build_pe_table(max_len: int, d_model: int) -> jnp.ndarray:
    """Plain-JAX parameter setup, identical math to the PyTorch __init__."""
    position = jnp.arange(max_len, dtype=jnp.float32)[:, None]
    div_term = jnp.exp(
        jnp.arange(0, d_model, 2, dtype=jnp.float32) * (-math.log(10000.0) / d_model)
    )
    pe = jnp.zeros((max_len, d_model), jnp.float32)
    pe = pe.at[:, 0::2].set(jnp.sin(position * div_term))
    pe = pe.at[:, 1::2].set(jnp.cos(position * div_term))
    return pe


def _broadcast_pe(pe_row, batch):
    # pe_row: (ts, D) -> (ts, B*D), matching the row-major reshape of (ts, B, D).
    if batch == 1:
        return pe_row
    return jnp.concatenate([pe_row] * batch, axis=1)


def _hash_u32(h):
    # lowbias32 integer hash -> well-mixed uint32 per element (VPU-only ops).
    h = h ^ (h >> 16)
    h = h * jnp.uint32(0x7FEB352D)
    h = h ^ (h >> 15)
    h = h * jnp.uint32(0x846CA68B)
    h = h ^ (h >> 16)
    return h


def _make_eval_kernel(batch):
    def kernel(x_ref, pe_ref, o_ref):
        # Compute in the input dtype (bf16-native on v6e/v7x; pe pre-cast in wrapper).
        o_ref[...] = (x_ref[...] + _broadcast_pe(pe_ref[...], batch)).astype(o_ref.dtype)

    return kernel


def _make_train_kernel(p: float, batch: int):
    # Integer-threshold dropout with 24-bit resolution:
    #   drop  <=>  hash(seed, flat_index) >> 8  <  round(p * 2^24)
    thr = int(round(p * (1 << 24)))
    scale = 1.0 / (1.0 - p)

    def kernel(seed_ref, x_ref, pe_ref, o_ref):
        ts, bd = x_ref.shape
        y = x_ref[...] + _broadcast_pe(pe_ref[...], batch)

        rows = lax.broadcasted_iota(jnp.int32, (ts, bd), 0)
        cols = lax.broadcasted_iota(jnp.int32, (ts, bd), 1)
        flat = ((rows + pl.program_id(0) * ts) * bd + cols).astype(jnp.uint32)
        h = _hash_u32(flat + seed_ref[0].astype(jnp.uint32) * jnp.uint32(0x9E3779B1))
        r24 = (h >> 8).astype(jnp.int32)  # uniform in [0, 2^24)

        o_ref[...] = jnp.where(r24 >= thr, y * scale, jnp.zeros_like(y)).astype(o_ref.dtype)

    return kernel


def _pick_ts(S, B, D, itemsize, budget_bytes=16 * 1024 * 1024):
    """Largest seq tile such that double-buffered (x + out + pe) tiles fit the
    VMEM budget and the sublane rule holds (ts % 8 == 0 or ts == S)."""
    per_row = itemsize * (2 * B * D + D)          # x tile + out tile + pe tile per seq row
    cap = max(1, budget_bytes // (2 * per_row))   # x2: double buffering
    cands = [d for d in range(1, S + 1)
             if S % d == 0 and d <= cap and (d % 8 == 0 or d == S)]
    return max(cands) if cands else S


@functools.partial(jax.jit, static_argnames=("p", "training", "ts"))
def positional_encoding(x, pe_table, seed=0, *, p: float = 0.1,
                        training: bool = False, ts: int | None = None):
    assert 0.0 <= p < 1.0, "dropout p must be in [0, 1)"
    S, B, D = x.shape
    BD = B * D

    # Lane-dense 2D views: free row-major reshape of x; pe stays (S, D).
    x2 = x.reshape(S, BD)
    pe = pe_table[:S].astype(x.dtype)

    if ts is None:
        ts = _pick_ts(S, B, D, jnp.dtype(x.dtype).itemsize)
    assert S % ts == 0, "seq_len must be divisible by the seq tile size"
    grid = (S // ts,)

    out_shape = jax.ShapeDtypeStruct((S, BD), x.dtype)
    compiler_params = pltpu.CompilerParams(
        dimension_semantics=("parallel",),       # independent tiles -> both v7x TCs
        vmem_limit_bytes=32 * 1024 * 1024,       # headroom over v5e's 16 MiB default
    )

    if training and p > 0.0:
        # TODO(synk): PyTorch's dropout RNG stream cannot be matched bit-exactly;
        # this uses a deterministic stateless hash of (seed, element index).
        seed_arr = jnp.asarray(seed, jnp.int32).reshape(1)
        grid_spec = pltpu.PrefetchScalarGridSpec(
            num_scalar_prefetch=1,               # seed lands in SMEM
            grid=grid,
            in_specs=[pl.BlockSpec((ts, BD), lambda i, s: (i, 0)),  # x tile
                      pl.BlockSpec((ts, D), lambda i, s: (i, 0))],  # pe rows
            out_specs=pl.BlockSpec((ts, BD), lambda i, s: (i, 0)),
        )
        out2 = pl.pallas_call(
            _make_train_kernel(p, B),
            out_shape=out_shape,
            grid_spec=grid_spec,
            compiler_params=compiler_params,
            input_output_aliases={1: 0},         # alias x (index 0 is the seed)
        )(seed_arr, x2, pe)
    else:
        # Eval fast path: pure add, no seed prefetch plumbing.
        grid_spec = pltpu.PrefetchScalarGridSpec(
            num_scalar_prefetch=0,
            grid=grid,
            in_specs=[pl.BlockSpec((ts, BD), lambda i: (i, 0)),
                      pl.BlockSpec((ts, D), lambda i: (i, 0))],
            out_specs=pl.BlockSpec((ts, BD), lambda i: (i, 0)),
        )
        out2 = pl.pallas_call(
            _make_eval_kernel(B),
            out_shape=out_shape,
            grid_spec=grid_spec,
            compiler_params=compiler_params,
            input_output_aliases={0: 0},         # alias x
        )(x2, pe)

    return out2.reshape(S, B, D)


if __name__ == "__main__":
    key = jax.random.PRNGKey(0)

    # Small shapes consistent with the module's forward: x is (seq, batch, d_model).
    seq_len, batch, d_model = 8, 2, 32
    max_len = 64

    x = jax.random.normal(key, (seq_len, batch, d_model), dtype=jnp.float32)
    pe_table = build_pe_table(max_len, d_model)

    # Eval-mode forward (dropout is identity) — check against a pure-JAX reference.
    out_eval = positional_encoding(x, pe_table, p=0.1, training=False)
    out_eval = jax.block_until_ready(out_eval)
    ref = x + pe_table[:seq_len][:, None, :]
    assert out_eval.shape == x.shape and out_eval.dtype == x.dtype
    assert jnp.allclose(out_eval, ref, atol=1e-5, rtol=1e-5), "mismatch vs reference"

    # Train-mode forward: every element must be either 0 (dropped) or (x+pe)/(1-p).
    p = 0.1
    out_train = positional_encoding(x, pe_table, 123, p=p, training=True)
    out_train = jax.block_until_ready(out_train)
    assert out_train.shape == x.shape and out_train.dtype == x.dtype
    scaled = ref * (1.0 / (1.0 - p))
    ok = jnp.isclose(out_train, 0.0) | jnp.isclose(out_train, scaled, atol=1e-4, rtol=1e-4)
    assert bool(jnp.all(ok)), "train-mode output is not {0, scaled(x+pe)}"

    print("KERNEL_OK")
</pallas_src>

<mosaic_0001>
module attributes {stable_mosaic.version = 11 : i64} {
  func.func @kernel(%arg0: i32, %arg1: memref<8x64xf32, #tpu.memory_space<vmem>>, %arg2: memref<8x32xf32, #tpu.memory_space<vmem>>, %arg3: memref<8x64xf32, #tpu.memory_space<vmem>>) attributes {dimension_semantics = [#tpu.dimension_semantics<parallel>], iteration_bounds = array<i64: 1>, scalar_prefetch = 0 : i64, scratch_operands = 0 : i64, tpu.core_type = #tpu.core_type<tc>, window_params = [{transform_indices = @transform_0, window_bounds = array<i64: 8, 64>}, {transform_indices = @transform_1, window_bounds = array<i64: 8, 32>}, {transform_indices = @transform_2, window_bounds = array<i64: 8, 64>}]} {
    %c0 = arith.constant 0 : index
    %c0_0 = arith.constant 0 : index
    %0 = vector.load %arg1[%c0, %c0_0] : memref<8x64xf32, #tpu.memory_space<vmem>>, vector<8x64xf32>
    %c0_1 = arith.constant 0 : index
    %c0_2 = arith.constant 0 : index
    %1 = vector.load %arg2[%c0_1, %c0_2] : memref<8x32xf32, #tpu.memory_space<vmem>>, vector<8x32xf32>
    %2 = tpu.concatenate %1, %1 in 1 : vector<8x32xf32>, vector<8x32xf32> -> vector<8x64xf32>
    %3 = arith.addf %0, %2 : vector<8x64xf32>
    %c0_3 = arith.constant 0 : index
    %c0_4 = arith.constant 0 : index
    %4 = vector.load %arg3[%c0_3, %c0_4] : memref<8x64xf32, #tpu.memory_space<vmem>>, vector<8x64xf32>
    tpu.vector_store %arg3[%c0_3, %c0_4], %3 {strides = array<i32>} : memref<8x64xf32, #tpu.memory_space<vmem>>, vector<8x64xf32>,
    return
  }
  func.func @transform_0(%arg0: i32) -> (i32, i32) {
    %c0_i32 = arith.constant 0 : i32
    %c0_i32_0 = arith.constant 0 : i32
    return %arg0, %c0_i32 : i32, i32
  }
  func.func @transform_1(%arg0: i32) -> (i32, i32) {
    %c0_i32 = arith.constant 0 : i32
    %c0_i32_0 = arith.constant 0 : i32
    return %arg0, %c0_i32 : i32, i32
  }
  func.func @transform_2(%arg0: i32) -> (i32, i32) {
    %c0_i32 = arith.constant 0 : i32
    %c0_i32_0 = arith.constant 0 : i32
    return %arg0, %c0_i32 : i32, i32
  }
}

</mosaic_0001>

<llo_original>
// kernel: positional_encoding.1
$region0: #{positional_encoding.1}
  #allocation0 [shape = 'u32[]', space=smem, size = 0x4, offset = 0x4, fixed_abs, tag = 'smem constant byte address 0x4 - core index']
  #allocation1 [shape = 'u32[144,128]{1,0:T(1,128)}', space=vmem, size = 0x12000, scoped, tag = 'internal scratch']
  %s0 = inlined_call_operand.vmem [shape: f32[8,64], index: 0, kind: input, shape index: {}, may-alias: {0,2}]
  %s1 = inlined_call_operand.vmem [shape: f32[8,32], index: 1, kind: input, shape index: {}]
  %s2 = inlined_call_operand.vmem [shape: f32[8,64], index: 2, kind: output, shape index: {}, may-alias: {0,2}]
  %s3 = sld [smem:[#allocation0]]
  $region18: #{positional_encoding.1} parent=0
    _
  %s5 = ssub.s32 1, %s3
  %s6 = scalar_select 0, %s5, %s3
  // Predicated region
  $region2: #{positional_encoding.1} parent=0 // pred_check
    _
  $region3: #{positional_encoding.1} parent=0 // pred_check_branch
    %8 = sbr.rel (0) target = $region5
  $region4: #{positional_encoding.1} parent=0 // pred_region
    _
  $region5: #{positional_encoding.1} parent=0 // pred_fallthru
    _
  // Predicated region
  $region6: #{positional_encoding.1} parent=0 // pred_check
    _
  $region7: #{positional_encoding.1} parent=0 // pred_check_branch
    %10 = sbr.rel (0) target = $region9
  $region8: #{positional_encoding.1} parent=0 // pred_region
    _
  $region9: #{positional_encoding.1} parent=0 // pred_fallthru
    _
  %v11 = vld [vmem:[%s0] sm:$0xff]
  %v12 = vld [vmem:[%s1] sm:$0xff]
  %14 = vrot.lane.b32.xlu0 %v12, 32
  %v15 = vpop.permute.xlu0 %14
  %vm17 = vcmask 261120
  %v18 = vsel %vm17, %v12, %v15
  %v19 = vadd.f32 %v11, %v18
  %vm20 = vcmask 523264
  %21 = vst.msk [vmem:[%s2] sm:$0xff] %vm20, %v19
  // Predicated region
  $region10: #{positional_encoding.1} parent=0 // pred_check
    _
  $region11: #{positional_encoding.1} parent=0 // pred_check_branch
    %23 = sbr.rel (0) target = $region13
  $region12: #{positional_encoding.1} parent=0 // pred_region
    _
  $region13: #{positional_encoding.1} parent=0 // pred_fallthru
    _
  // Predicated region
  $region14: #{positional_encoding.1} parent=0 // pred_check
    _
  $region15: #{positional_encoding.1} parent=0 // pred_check_branch
    %25 = sbr.rel (0) target = $region17
  $region16: #{positional_encoding.1} parent=0 // pred_region
    _
  $region17: #{positional_encoding.1} parent=0 // pred_fallthru
    _

</llo_original>
